<compile_context>
chip_gen: v5e
topology: v5e:2x2
jax: 0.10.0
libtpu: 0.0.40
codegen_flags: <defaults>
</compile_context>

<pallas_src>
import functools

import jax
import jax.numpy as jnp
from jax import lax
from jax.experimental import pallas as pl
from jax.experimental.pallas import tpu as pltpu


# ------------------------------ fused kernel ------------------------------ #

def _make_layer_kernel(*, Cin, Cout, K, Lout, downsample):
    """Fused Layer kernel for one batch sample. All shape args are static."""
    P = K // 2
    f32 = jnp.float32
    bf16 = jnp.bfloat16

    def shift_cols(u, sh):
        # v[:, l] = u[:, l + sh], zero-filled outside [0, Lout) ("same" pad).
        if sh == 0:
            return u
        C = u.shape[0]
        z = jnp.zeros((C, abs(sh)), u.dtype)
        if sh > 0:
            return jnp.concatenate([u[:, sh:], z], axis=1)
        return jnp.concatenate([z, u[:, :Lout + sh]], axis=1)

    def conv_bn(u, w_ref, b_ref):
        # stride-1 "same" Conv1d + folded BN as ONE matmul: stack the K
        # shifted copies along the contraction axis (tap-outer, channel-inner
        # to match the (Cout, K*C) weight layout).  bf16 operands on the MXU,
        # f32 accumulation; single bias add afterwards.
        stacked = jnp.concatenate([shift_cols(u, t - P) for t in range(K)],
                                  axis=0)                       # (K*C, Lout)
        return jnp.dot(w_ref[...], stacked,
                       preferred_element_type=f32) + b_ref[...]

    def tail(h, sc, w2_ref, b2_ref, w3_ref, b3_ref, w4_ref, b4_ref, o_ref):
        # block1: conv2+bn2 + shortcut + ReLU (torch forward skips act1).
        y1 = jnp.maximum(conv_bn(h.astype(bf16), w2_ref, b2_ref) + sc, 0.0)
        # block2: conv1+bn1 ; conv2+bn2 + identity shortcut + ReLU.
        h2 = conv_bn(y1.astype(bf16), w3_ref, b3_ref)
        y2 = jnp.maximum(conv_bn(h2.astype(bf16), w4_ref, b4_ref) + y1, 0.0)
        o_ref[...] = y2.astype(o_ref.dtype)

    if downsample:   # block1.conv1 has stride 2; conv(k=1,s=2)+bn shortcut.
        def kernel(xph_ref, w1_ref, b1_ref, wd_ref, bd_ref,
                   w2_ref, b2_ref, w3_ref, b3_ref, w4_ref, b4_ref, o_ref):
            xph = xph_ref[...]                     # (2*Cin, Lout): [even; odd]
            xe, xo = xph[:Cin], xph[Cin:]
            # stride-2 tap d: x[2l + d] = phase[d % 2][l + (d - d%2)//2]
            taps = []
            for t in range(K):
                d = t - P
                p = d % 2
                taps.append(shift_cols(xe if p == 0 else xo, (d - p) // 2))
            stacked = jnp.concatenate(taps, axis=0)             # (K*Cin, Lout)
            h = jnp.dot(w1_ref[...], stacked,
                        preferred_element_type=f32) + b1_ref[...]
            # downsample shortcut Conv1d(k=1, stride=2)+bn == matmul on the
            # even phase (x[:, 2l]).
            sc = jnp.dot(wd_ref[...], xe,
                         preferred_element_type=f32) + bd_ref[...]
            tail(h, sc, w2_ref, b2_ref, w3_ref, b3_ref, w4_ref, b4_ref, o_ref)
    else:            # block1.conv1 stride 1; identity shortcut.
        def kernel(x_ref, w1_ref, b1_ref,
                   w2_ref, b2_ref, w3_ref, b3_ref, w4_ref, b4_ref, o_ref):
            xb = x_ref[...]                        # (Cin, Lout) bf16
            h = conv_bn(xb, w1_ref, b1_ref)
            sc = xb.astype(f32)                    # residual add kept in f32
            tail(h, sc, w2_ref, b2_ref, w3_ref, b3_ref, w4_ref, b4_ref, o_ref)

    return kernel


# ------------------------------- JAX wrapper ------------------------------- #

def layer_forward(x, p1, p2, *, stride, downsample, eps=1e-5):
    """Forward pass of `Layer` as one fused, batch-gridded Pallas TPU kernel.

    x: (B, Cin, L) float32.  p1/p2: parameter dicts (arrays only).
    `stride` / `downsample` are static Python structure flags.
    """
    B, Cin, L = x.shape
    Cout, _, K = p1["w1"].shape
    P = K // 2
    assert K % 2 == 1, "odd kernel_size expected (padding = K // 2)"
    if downsample:
        assert stride == 2, "torch downsample path hardwires stride 2"
    else:
        assert stride == 1 and Cin == Cout, \
            "identity shortcut needs stride=1 and Cin == Cout"
    Lout = (L + 2 * P - K) // stride + 1
    bf16 = jnp.bfloat16

    # Fold conv bias + BN(eval) into (scale-into-weights, per-channel shift).
    def fold(w, b, bn):
        gamma, beta, mean, var = bn
        scale = gamma / jnp.sqrt(var + eps)
        shift = (beta + scale * (b - mean)).reshape(-1, 1).astype(jnp.float32)
        return scale, shift

    def mat_kc(w, scale):   # (O, C, K) -> (O, K*C), columns ordered (t, c)
        o, c, k = w.shape
        return (scale[:, None, None] * w).transpose(0, 2, 1) \
                                          .reshape(o, k * c).astype(bf16)

    s1, t1 = fold(p1["w1"], p1["b1"], p1["bn1"])
    s2, t2 = fold(p1["w2"], p1["b2"], p1["bn2"])
    s3, t3 = fold(p2["w1"], p2["b1"], p2["bn1"])
    s4, t4 = fold(p2["w2"], p2["b2"], p2["bn2"])
    w1m, w2m = mat_kc(p1["w1"], s1), mat_kc(p1["w2"], s2)
    w3m, w4m = mat_kc(p2["w1"], s3), mat_kc(p2["w2"], s4)

    x_bf = x.astype(bf16)   # bf16 input: halves HBM->VMEM traffic

    if downsample:
        sd, td = fold(p1["wd"], p1["bd"], p1["bnd"])
        wdm = (sd[:, None] * p1["wd"][:, :, 0]).astype(bf16)     # (Cout, Cin)
        # Even/odd phase split of x (single pass, no K-fold amplification).
        Lh = (L + 1) // 2
        assert Lh == Lout
        xe = x_bf[:, :, 0::2]
        xo = x_bf[:, :, 1::2]
        if xo.shape[-1] < Lh:
            xo = jnp.pad(xo, ((0, 0), (0, 0), (0, Lh - xo.shape[-1])))
        xph = jnp.concatenate([xe, xo], axis=1)                  # (B, 2Cin, Lh)
        args = (xph, w1m, t1, wdm, td, w2m, t2, w3m, t3, w4m, t4)
        x_spec = pl.BlockSpec((None, 2 * Cin, Lh), lambda b: (b, 0, 0))
    else:
        args = (x_bf, w1m, t1, w2m, t2, w3m, t3, w4m, t4)
        x_spec = pl.BlockSpec((None, Cin, L), lambda b: (b, 0, 0))

    def full_spec(a):       # whole-array block, resident across the grid
        return pl.BlockSpec(a.shape, lambda b, _nd=a.ndim: (0,) * _nd)

    in_specs = [x_spec] + [full_spec(a) for a in args[1:]]

    kernel = _make_layer_kernel(Cin=Cin, Cout=Cout, K=K, Lout=Lout,
                                downsample=downsample)

    out = pl.pallas_call(
        kernel,
        out_shape=jax.ShapeDtypeStruct((B, Cout, Lout), jnp.float32),
        grid=(B,),
        in_specs=in_specs,
        out_specs=pl.BlockSpec((None, Cout, Lout), lambda b: (b, 0, 0)),
        compiler_params=pltpu.CompilerParams(
            dimension_semantics=("parallel",),       # 2 TCs on v7x split B
            vmem_limit_bytes=32 * 1024 * 1024),
    )(*args)
    return out.astype(x.dtype)


# ------------------------- parameter construction ------------------------- #

def _init_conv(key, o, i, k):
    kw, kb = jax.random.split(key)
    w = 0.1 * jax.random.normal(kw, (o, i, k), jnp.float32)
    b = 0.1 * jax.random.normal(kb, (o,), jnp.float32)
    return w, b


def _init_bn(key, c):
    k1, k2, k3, k4 = jax.random.split(key, 4)
    gamma = 1.0 + 0.1 * jax.random.normal(k1, (c,), jnp.float32)
    beta = 0.1 * jax.random.normal(k2, (c,), jnp.float32)
    mean = 0.1 * jax.random.normal(k3, (c,), jnp.float32)
    var = 1.0 + 0.2 * jax.random.uniform(k4, (c,), jnp.float32)
    return gamma, beta, mean, var


def make_basic_block_params(key, inch, outch, k, downsample):
    keys = jax.random.split(key, 6)
    w1, b1 = _init_conv(keys[0], outch, inch, k)
    bn1 = _init_bn(keys[1], outch)
    w2, b2 = _init_conv(keys[2], outch, outch, k)
    bn2 = _init_bn(keys[3], outch)
    p = {"w1": w1, "b1": b1, "bn1": bn1, "w2": w2, "b2": b2, "bn2": bn2}
    if downsample:
        wd, bd = _init_conv(keys[4], outch, inch, 1)
        bnd = _init_bn(keys[5], outch)
        p.update({"wd": wd, "bd": bd, "bnd": bnd})
    return p


# ------------------------------ pure-JAX ref ------------------------------ #

def _ref_conv1d(x, w, b, stride, pad):
    y = lax.conv_general_dilated(x, w, (stride,), [(pad, pad)],
                                 dimension_numbers=("NCH", "OIH", "NCH"))
    return y + b[None, :, None]


def _ref_bn(x, gamma, beta, mean, var, eps=1e-5):
    return (x - mean[None, :, None]) / jnp.sqrt(var[None, :, None] + eps) \
        * gamma[None, :, None] + beta[None, :, None]


def _ref_block(x, p, stride, k, downsample):
    h = _ref_bn(_ref_conv1d(x, p["w1"], p["b1"], stride, k // 2), *p["bn1"])
    h = _ref_bn(_ref_conv1d(h, p["w2"], p["b2"], 1, k // 2), *p["bn2"])
    if downsample:
        sc = _ref_bn(_ref_conv1d(x, p["wd"], p["bd"], 2, 0), *p["bnd"])
    else:
        sc = x
    return jnp.maximum(h + sc, 0.0)


def _ref_layer(x, p1, p2, stride, k, downsample):
    return _ref_block(_ref_block(x, p1, stride, k, downsample), p2, 1, k, False)


# ---------------------------------- main ---------------------------------- #

if __name__ == "__main__":
    # Layer(inchannel=4, outchannel=8, kernel_size=3, stride=2, downsample=True)
    B, Cin, L = 2, 4, 16
    Cout, K, STRIDE = 8, 3, 2

    root = jax.random.PRNGKey(0)
    kx, kb1, kb2 = jax.random.split(root, 3)

    x = jax.random.normal(kx, (B, Cin, L), jnp.float32)
    p1 = make_basic_block_params(kb1, Cin, Cout, K, downsample=True)
    p2 = make_basic_block_params(kb2, Cout, Cout, K, downsample=False)

    fwd = jax.jit(functools.partial(layer_forward, stride=STRIDE, downsample=True))
    out = jax.block_until_ready(fwd(x, p1, p2))

    ref = _ref_layer(x, p1, p2, STRIDE, K, downsample=True)
    assert out.shape == (B, Cout, L // 2), out.shape
    # bf16 matmul operands / bf16 input with f32 accumulation -> loosened tol.
    assert jnp.allclose(out, ref, atol=2e-2, rtol=2e-2), \
        float(jnp.max(jnp.abs(out - ref)))

    # Second config: Layer(8, 8, k=3, stride=1, downsample=False)
    # exercises the identity-shortcut path of block1.
    x2 = jax.random.normal(jax.random.split(kx)[0], (B, Cout, L), jnp.float32)
    q1 = make_basic_block_params(jax.random.split(kb1)[0], Cout, Cout, K,
                                 downsample=False)
    q2 = make_basic_block_params(jax.random.split(kb2)[0], Cout, Cout, K,
                                 downsample=False)
    fwd2 = jax.jit(functools.partial(layer_forward, stride=1, downsample=False))
    out2 = jax.block_until_ready(fwd2(x2, q1, q2))
    ref2 = _ref_layer(x2, q1, q2, 1, K, downsample=False)
    assert out2.shape == (B, Cout, L), out2.shape
    assert jnp.allclose(out2, ref2, atol=2e-2, rtol=2e-2), \
        float(jnp.max(jnp.abs(out2 - ref2)))

    print("KERNEL_OK")
</pallas_src>

<mosaic_0001>
module attributes {stable_mosaic.version = 11 : i64} {
  func.func @kernel(%arg0: i32, %arg1: memref<1x8x8xbf16, #tpu.memory_space<vmem>>, %arg2: memref<8x12xbf16, #tpu.memory_space<vmem>>, %arg3: memref<8x1xf32, #tpu.memory_space<vmem>>, %arg4: memref<8x4xbf16, #tpu.memory_space<vmem>>, %arg5: memref<8x1xf32, #tpu.memory_space<vmem>>, %arg6: memref<8x24xbf16, #tpu.memory_space<vmem>>, %arg7: memref<8x1xf32, #tpu.memory_space<vmem>>, %arg8: memref<8x24xbf16, #tpu.memory_space<vmem>>, %arg9: memref<8x1xf32, #tpu.memory_space<vmem>>, %arg10: memref<8x24xbf16, #tpu.memory_space<vmem>>, %arg11: memref<8x1xf32, #tpu.memory_space<vmem>>, %arg12: memref<1x8x8xf32, #tpu.memory_space<vmem>>) attributes {dimension_semantics = [#tpu.dimension_semantics<parallel>], iteration_bounds = array<i64: 2>, scalar_prefetch = 0 : i64, scratch_operands = 0 : i64, tpu.core_type = #tpu.core_type<tc>, window_params = [{transform_indices = @transform_0, window_bounds = array<i64: 1, 8, 8>}, {pipeline_mode = #tpu.pipeline_mode<synchronous>, transform_indices = @transform_1, window_bounds = array<i64: 8, 12>}, {pipeline_mode = #tpu.pipeline_mode<synchronous>, transform_indices = @transform_2, window_bounds = array<i64: 8, 1>}, {pipeline_mode = #tpu.pipeline_mode<synchronous>, transform_indices = @transform_3, window_bounds = array<i64: 8, 4>}, {pipeline_mode = #tpu.pipeline_mode<synchronous>, transform_indices = @transform_4, window_bounds = array<i64: 8, 1>}, {pipeline_mode = #tpu.pipeline_mode<synchronous>, transform_indices = @transform_5, window_bounds = array<i64: 8, 24>}, {pipeline_mode = #tpu.pipeline_mode<synchronous>, transform_indices = @transform_6, window_bounds = array<i64: 8, 1>}, {pipeline_mode = #tpu.pipeline_mode<synchronous>, transform_indices = @transform_7, window_bounds = array<i64: 8, 24>}, {pipeline_mode = #tpu.pipeline_mode<synchronous>, transform_indices = @transform_8, window_bounds = array<i64: 8, 1>}, {pipeline_mode = #tpu.pipeline_mode<synchronous>, transform_indices = @transform_9, window_bounds = array<i64: 8, 24>}, {pipeline_mode = #tpu.pipeline_mode<synchronous>, transform_indices = @transform_10, window_bounds = array<i64: 8, 1>}, {transform_indices = @transform_11, window_bounds = array<i64: 1, 8, 8>}]} {
    %c0 = arith.constant 0 : index
    %c0_0 = arith.constant 0 : index
    %c0_1 = arith.constant 0 : index
    %0 = vector.load %arg1[%c0, %c0_0, %c0_1] : memref<1x8x8xbf16, #tpu.memory_space<vmem>>, vector<1x8x8xbf16>
    %1 = vector.shape_cast %0 : vector<1x8x8xbf16> to vector<8x8xbf16>
    %2 = vector.extract_strided_slice %1 {offsets = [0, 0], sizes = [4, 8], strides = [1, 1]} : vector<8x8xbf16> to vector<4x8xbf16>
    %3 = vector.extract_strided_slice %1 {offsets = [4, 0], sizes = [4, 8], strides = [1, 1]} : vector<8x8xbf16> to vector<4x8xbf16>
    %cst = arith.constant 0.000000e+00 : bf16
    %4 = vector.broadcast %cst : bf16 to vector<4x1xbf16>
    %5 = vector.extract_strided_slice %3 {offsets = [0, 0], sizes = [4, 7], strides = [1, 1]} : vector<4x8xbf16> to vector<4x7xbf16>
    %6 = tpu.concatenate %4, %5 in 1 : vector<4x1xbf16>, vector<4x7xbf16> -> vector<4x8xbf16>
    %7 = tpu.concatenate %6, %2, %3 in 0 : vector<4x8xbf16>, vector<4x8xbf16>, vector<4x8xbf16> -> vector<12x8xbf16>
    %c0_2 = arith.constant 0 : index
    %c0_3 = arith.constant 0 : index
    %8 = vector.load %arg2[%c0_2, %c0_3] : memref<8x12xbf16, #tpu.memory_space<vmem>>, vector<8x12xbf16>
    %cst_4 = arith.constant dense<0.000000e+00> : vector<8x8xf32>
    %9 = tpu.matmul %8, %7, %cst_4 {dimension_numbers = #tpu.dot_dimension_numbers<[1], [0], [0], [1], [0, 0, 1, 1], [], []>} : vector<8x12xbf16>, vector<12x8xbf16>, vector<8x8xf32> -> vector<8x8xf32>
    %c0_5 = arith.constant 0 : index
    %c0_6 = arith.constant 0 : index
    %10 = vector.load %arg3[%c0_5, %c0_6] : memref<8x1xf32, #tpu.memory_space<vmem>>, vector<8x1xf32>
    %11 = vector.broadcast %10 : vector<8x1xf32> to vector<8x8xf32>
    %12 = arith.addf %9, %11 : vector<8x8xf32>
    %c0_7 = arith.constant 0 : index
    %c0_8 = arith.constant 0 : index
    %13 = vector.load %arg4[%c0_7, %c0_8] : memref<8x4xbf16, #tpu.memory_space<vmem>>, vector<8x4xbf16>
    %cst_9 = arith.constant dense<0.000000e+00> : vector<8x8xf32>
    %14 = tpu.matmul %13, %2, %cst_9 {dimension_numbers = #tpu.dot_dimension_numbers<[1], [0], [0], [1], [0, 0, 1, 1], [], []>} : vector<8x4xbf16>, vector<4x8xbf16>, vector<8x8xf32> -> vector<8x8xf32>
    %c0_10 = arith.constant 0 : index
    %c0_11 = arith.constant 0 : index
    %15 = vector.load %arg5[%c0_10, %c0_11] : memref<8x1xf32, #tpu.memory_space<vmem>>, vector<8x1xf32>
    %16 = vector.broadcast %15 : vector<8x1xf32> to vector<8x8xf32>
    %17 = arith.addf %14, %16 : vector<8x8xf32>
    %18 = arith.truncf %12 : vector<8x8xf32> to vector<8x8xbf16>
    %cst_12 = arith.constant 0.000000e+00 : bf16
    %19 = vector.broadcast %cst_12 : bf16 to vector<8x1xbf16>
    %20 = vector.extract_strided_slice %18 {offsets = [0, 0], sizes = [8, 7], strides = [1, 1]} : vector<8x8xbf16> to vector<8x7xbf16>
    %21 = tpu.concatenate %19, %20 in 1 : vector<8x1xbf16>, vector<8x7xbf16> -> vector<8x8xbf16>
    %cst_13 = arith.constant 0.000000e+00 : bf16
    %22 = vector.broadcast %cst_13 : bf16 to vector<8x1xbf16>
    %23 = vector.extract_strided_slice %18 {offsets = [0, 1], sizes = [8, 7], strides = [1, 1]} : vector<8x8xbf16> to vector<8x7xbf16>
    %24 = tpu.concatenate %23, %22 in 1 : vector<8x7xbf16>, vector<8x1xbf16> -> vector<8x8xbf16>
    %25 = tpu.concatenate %21, %18, %24 in 0 : vector<8x8xbf16>, vector<8x8xbf16>, vector<8x8xbf16> -> vector<24x8xbf16>
    %c0_14 = arith.constant 0 : index
    %c0_15 = arith.constant 0 : index
    %26 = vector.load %arg6[%c0_14, %c0_15] : memref<8x24xbf16, #tpu.memory_space<vmem>>, vector<8x24xbf16>
    %cst_16 = arith.constant dense<0.000000e+00> : vector<8x8xf32>
    %27 = tpu.matmul %26, %25, %cst_16 {dimension_numbers = #tpu.dot_dimension_numbers<[1], [0], [0], [1], [0, 0, 1, 1], [], []>} : vector<8x24xbf16>, vector<24x8xbf16>, vector<8x8xf32> -> vector<8x8xf32>
    %c0_17 = arith.constant 0 : index
    %c0_18 = arith.constant 0 : index
    %28 = vector.load %arg7[%c0_17, %c0_18] : memref<8x1xf32, #tpu.memory_space<vmem>>, vector<8x1xf32>
    %29 = vector.broadcast %28 : vector<8x1xf32> to vector<8x8xf32>
    %30 = arith.addf %27, %29 : vector<8x8xf32>
    %31 = arith.addf %30, %17 : vector<8x8xf32>
    %cst_19 = arith.constant 0.000000e+00 : f32
    %32 = vector.broadcast %cst_19 : f32 to vector<8x8xf32>
    %33 = arith.maximumf %31, %32 : vector<8x8xf32>
    %34 = arith.truncf %33 : vector<8x8xf32> to vector<8x8xbf16>
    %cst_20 = arith.constant 0.000000e+00 : bf16
    %35 = vector.broadcast %cst_20 : bf16 to vector<8x1xbf16>
    %36 = vector.extract_strided_slice %34 {offsets = [0, 0], sizes = [8, 7], strides = [1, 1]} : vector<8x8xbf16> to vector<8x7xbf16>
    %37 = tpu.concatenate %35, %36 in 1 : vector<8x1xbf16>, vector<8x7xbf16> -> vector<8x8xbf16>
    %cst_21 = arith.constant 0.000000e+00 : bf16
    %38 = vector.broadcast %cst_21 : bf16 to vector<8x1xbf16>
    %39 = vector.extract_strided_slice %34 {offsets = [0, 1], sizes = [8, 7], strides = [1, 1]} : vector<8x8xbf16> to vector<8x7xbf16>
    %40 = tpu.concatenate %39, %38 in 1 : vector<8x7xbf16>, vector<8x1xbf16> -> vector<8x8xbf16>
    %41 = tpu.concatenate %37, %34, %40 in 0 : vector<8x8xbf16>, vector<8x8xbf16>, vector<8x8xbf16> -> vector<24x8xbf16>
    %c0_22 = arith.constant 0 : index
    %c0_23 = arith.constant 0 : index
    %42 = vector.load %arg8[%c0_22, %c0_23] : memref<8x24xbf16, #tpu.memory_space<vmem>>, vector<8x24xbf16>
    %cst_24 = arith.constant dense<0.000000e+00> : vector<8x8xf32>
    %43 = tpu.matmul %42, %41, %cst_24 {dimension_numbers = #tpu.dot_dimension_numbers<[1], [0], [0], [1], [0, 0, 1, 1], [], []>} : vector<8x24xbf16>, vector<24x8xbf16>, vector<8x8xf32> -> vector<8x8xf32>
    %c0_25 = arith.constant 0 : index
    %c0_26 = arith.constant 0 : index
    %44 = vector.load %arg9[%c0_25, %c0_26] : memref<8x1xf32, #tpu.memory_space<vmem>>, vector<8x1xf32>
    %45 = vector.broadcast %44 : vector<8x1xf32> to vector<8x8xf32>
    %46 = arith.addf %43, %45 : vector<8x8xf32>
    %47 = arith.truncf %46 : vector<8x8xf32> to vector<8x8xbf16>
    %cst_27 = arith.constant 0.000000e+00 : bf16
    %48 = vector.broadcast %cst_27 : bf16 to vector<8x1xbf16>
    %49 = vector.extract_strided_slice %47 {offsets = [0, 0], sizes = [8, 7], strides = [1, 1]} : vector<8x8xbf16> to vector<8x7xbf16>
    %50 = tpu.concatenate %48, %49 in 1 : vector<8x1xbf16>, vector<8x7xbf16> -> vector<8x8xbf16>
    %cst_28 = arith.constant 0.000000e+00 : bf16
    %51 = vector.broadcast %cst_28 : bf16 to vector<8x1xbf16>
    %52 = vector.extract_strided_slice %47 {offsets = [0, 1], sizes = [8, 7], strides = [1, 1]} : vector<8x8xbf16> to vector<8x7xbf16>
    %53 = tpu.concatenate %52, %51 in 1 : vector<8x7xbf16>, vector<8x1xbf16> -> vector<8x8xbf16>
    %54 = tpu.concatenate %50, %47, %53 in 0 : vector<8x8xbf16>, vector<8x8xbf16>, vector<8x8xbf16> -> vector<24x8xbf16>
    %c0_29 = arith.constant 0 : index
    %c0_30 = arith.constant 0 : index
    %55 = vector.load %arg10[%c0_29, %c0_30] : memref<8x24xbf16, #tpu.memory_space<vmem>>, vector<8x24xbf16>
    %cst_31 = arith.constant dense<0.000000e+00> : vector<8x8xf32>
    %56 = tpu.matmul %55, %54, %cst_31 {dimension_numbers = #tpu.dot_dimension_numbers<[1], [0], [0], [1], [0, 0, 1, 1], [], []>} : vector<8x24xbf16>, vector<24x8xbf16>, vector<8x8xf32> -> vector<8x8xf32>
    %c0_32 = arith.constant 0 : index
    %c0_33 = arith.constant 0 : index
    %57 = vector.load %arg11[%c0_32, %c0_33] : memref<8x1xf32, #tpu.memory_space<vmem>>, vector<8x1xf32>
    %58 = vector.broadcast %57 : vector<8x1xf32> to vector<8x8xf32>
    %59 = arith.addf %56, %58 : vector<8x8xf32>
    %60 = arith.addf %59, %33 : vector<8x8xf32>
    %cst_34 = arith.constant 0.000000e+00 : f32
    %61 = vector.broadcast %cst_34 : f32 to vector<8x8xf32>
    %62 = arith.maximumf %60, %61 : vector<8x8xf32>
    %c0_35 = arith.constant 0 : index
    %c0_36 = arith.constant 0 : index
    %c0_37 = arith.constant 0 : index
    %63 = vector.load %arg12[%c0_35, %c0_36, %c0_37] : memref<1x8x8xf32, #tpu.memory_space<vmem>>, vector<1x8x8xf32>
    %64 = vector.shape_cast %63 : vector<1x8x8xf32> to vector<8x8xf32>
    %65 = vector.shape_cast %62 : vector<8x8xf32> to vector<1x8x8xf32>
    tpu.vector_store %arg12[%c0_35, %c0_36, %c0_37], %65 {strides = array<i32>} : memref<1x8x8xf32, #tpu.memory_space<vmem>>, vector<1x8x8xf32>,
    return
  }
  func.func @transform_0(%arg0: i32) -> (i32, i32, i32) {
    %c0_i32 = arith.constant 0 : i32
    %c0_i32_0 = arith.constant 0 : i32
    %c0_i32_1 = arith.constant 0 : i32
    return %arg0, %c0_i32, %c0_i32_0 : i32, i32, i32
  }
  func.func @transform_1(%arg0: i32) -> (i32, i32) {
    %c0_i32 = arith.constant 0 : i32
    %c0_i32_0 = arith.constant 0 : i32
    %c0_i32_1 = arith.constant 0 : i32
    return %c0_i32, %c0_i32_0 : i32, i32
  }
  func.func @transform_2(%arg0: i32) -> (i32, i32) {
    %c0_i32 = arith.constant 0 : i32
    %c0_i32_0 = arith.constant 0 : i32
    %c0_i32_1 = arith.constant 0 : i32
    return %c0_i32, %c0_i32_0 : i32, i32
  }
  func.func @transform_3(%arg0: i32) -> (i32, i32) {
    %c0_i32 = arith.constant 0 : i32
    %c0_i32_0 = arith.constant 0 : i32
    %c0_i32_1 = arith.constant 0 : i32
    return %c0_i32, %c0_i32_0 : i32, i32
  }
  func.func @transform_4(%arg0: i32) -> (i32, i32) {
    %c0_i32 = arith.constant 0 : i32
    %c0_i32_0 = arith.constant 0 : i32
    %c0_i32_1 = arith.constant 0 : i32
    return %c0_i32, %c0_i32_0 : i32, i32
  }
  func.func @transform_5(%arg0: i32) -> (i32, i32) {
    %c0_i32 = arith.constant 0 : i32
    %c0_i32_0 = arith.constant 0 : i32
    %c0_i32_1 = arith.constant 0 : i32
    return %c0_i32, %c0_i32_0 : i32, i32
  }
  func.func @transform_6(%arg0: i32) -> (i32, i32) {
    %c0_i32 = arith.constant 0 : i32
    %c0_i32_0 = arith.constant 0 : i32
    %c0_i32_1 = arith.constant 0 : i32
    return %c0_i32, %c0_i32_0 : i32, i32
  }
  func.func @transform_7(%arg0: i32) -> (i32, i32) {
    %c0_i32 = arith.constant 0 : i32
    %c0_i32_0 = arith.constant 0 : i32
    %c0_i32_1 = arith.constant 0 : i32
    return %c0_i32, %c0_i32_0 : i32, i32
  }
  func.func @transform_8(%arg0: i32) -> (i32, i32) {
    %c0_i32 = arith.constant 0 : i32
    %c0_i32_0 = arith.constant 0 : i32
    %c0_i32_1 = arith.constant 0 : i32
    return %c0_i32, %c0_i32_0 : i32, i32
  }
  func.func @transform_9(%arg0: i32) -> (i32, i32) {
    %c0_i32 = arith.constant 0 : i32
    %c0_i32_0 = arith.constant 0 : i32
    %c0_i32_1 = arith.constant 0 : i32
    return %c0_i32, %c0_i32_0 : i32, i32
  }
  func.func @transform_10(%arg0: i32) -> (i32, i32) {
    %c0_i32 = arith.constant 0 : i32
    %c0_i32_0 = arith.constant 0 : i32
    %c0_i32_1 = arith.constant 0 : i32
    return %c0_i32, %c0_i32_0 : i32, i32
  }
  func.func @transform_11(%arg0: i32) -> (i32, i32, i32) {
    %c0_i32 = arith.constant 0 : i32
    %c0_i32_0 = arith.constant 0 : i32
    %c0_i32_1 = arith.constant 0 : i32
    return %arg0, %c0_i32, %c0_i32_0 : i32, i32, i32
  }
}

</mosaic_0001>

<llo_original>
// kernel: layer_forward.1
$region0: #{layer_forward.1}
  #allocation0 [shape = 'u32[]', space=smem, size = 0x4, offset = 0x4, fixed_abs, tag = 'smem constant byte address 0x4 - core index']
  #allocation1 [shape = 'u32[72,128]{1,0:T(1,128)}', space=vmem, size = 0x9000, scoped, tag = 'internal scratch']
  %s0 = inlined_call_operand.vmem [shape: bf16[2,8,8], index: 0, kind: input, shape index: {}]
  %s1 = inlined_call_operand.vmem [shape: bf16[8,12], index: 1, kind: input, shape index: {}]
  %s2 = inlined_call_operand.vmem [shape: f32[8,1], index: 2, kind: input, shape index: {}]
  %s3 = inlined_call_operand.vmem [shape: bf16[8,4], index: 3, kind: input, shape index: {}]
  %s4 = inlined_call_operand.vmem [shape: f32[8,1], index: 4, kind: input, shape index: {}]
  %s5 = inlined_call_operand.vmem [shape: bf16[8,24], index: 5, kind: input, shape index: {}]
  %s6 = inlined_call_operand.vmem [shape: f32[8,1], index: 6, kind: input, shape index: {}]
  %s7 = inlined_call_operand.vmem [shape: bf16[8,24], index: 7, kind: input, shape index: {}]
  %s8 = inlined_call_operand.vmem [shape: f32[8,1], index: 8, kind: input, shape index: {}]
  %s9 = inlined_call_operand.vmem [shape: bf16[8,24], index: 9, kind: input, shape index: {}]
  %s10 = inlined_call_operand.vmem [shape: f32[8,1], index: 10, kind: input, shape index: {}]
  %s11 = inlined_call_operand.hbm [shape: f32[2,8,8], index: 11, kind: output, shape index: {}]
  %s12 = sld [smem:[#allocation0]]
  $region77: #{layer_forward.1} parent=0
    _
  %s14 = ssub.s32 1, %s12
  %s15 = scalar_select 0, %s14, %s12
  $region1: #{layer_forward.1} parent=0
    #allocation2 [shape = 'u8[8192]{0}', space=vmem, size = 0x2000, scoped, tag = 'output window, operand 0']
    #allocation3 [shape = 's32[2]{0}', space=sflag, size = 0x8, scoped, tag = 'scoped memory for layer_forward.1']
    %16 = vsyncpa [#allocation3], 0
    %s17 = scalar_lea.sflag [#allocation3], 1
    %18 = vsyncpa %s17, 0
    loop: start=0, step=1, limit=4
    $region2: #{layer_forward.1} parent=1 // loop_pre_header
      _
    $region3: #{layer_forward.1} parent=1 // loop_header
      %s20 = sphi 0, %s24
      %p21 = scmp.ge.s32.totalorder %s20, 4
      %s30 = sphi 0, %s32
      %s33 = sphi 0, %s30
      %s34 = sphi 0, %s33
      %s50 = sphi 0, %s34
      %s54 = sphi 0, %s54
      %s56 = sphi 0, %s54
      %s57 = sphi 0, %s56
      %s71 = sphi 0, %s57
      %s75 = sphi 0, %s75
      %s77 = sphi 0, %s75
      %s78 = sphi 0, %s77
      %s92 = sphi 0, %s78
      %s96 = sphi 0, %s96
      %s98 = sphi 0, %s96
      %s99 = sphi 0, %s98
      %s113 = sphi 0, %s99
      %s117 = sphi 0, %s117
      %s119 = sphi 0, %s117
      %s120 = sphi 0, %s119
      %s134 = sphi 0, %s120
      %s138 = sphi 0, %s138
      %s140 = sphi 0, %s138
      %s141 = sphi 0, %s140
      %s155 = sphi 0, %s141
      %s159 = sphi 0, %s159
      %s161 = sphi 0, %s159
      %s162 = sphi 0, %s161
      %s176 = sphi 0, %s162
      %s180 = sphi 0, %s180
      %s182 = sphi 0, %s180
      %s183 = sphi 0, %s182
      %s197 = sphi 0, %s183
      %s201 = sphi 0, %s201
      %s203 = sphi 0, %s201
      %s204 = sphi 0, %s203
      %s218 = sphi 0, %s204
      %s222 = sphi 0, %s222
      %s224 = sphi 0, %s222
      %s225 = sphi 0, %s224
      %s239 = sphi 0, %s225
      %s243 = sphi 0, %s243
      %s245 = sphi 0, %s243
      %s246 = sphi 0, %s245
      %s260 = sphi 0, %s246
      %s266 = sphi 0, %s268
      %s269 = sphi 0, %s266
      %s270 = sphi 0, %s269
      %s286 = sphi 0, %s270
    $region4: #{layer_forward.1} parent=1 // loop_header_branch
      %23 = sbr.rel (%p21) target = $region8
    $region5: #{layer_forward.1} parent=1 // loop_body
      %s25 = ssub.s32 %s20, 1
      %s26 = ssub.s32 %s20, 2
      %s27 = sadd.s32 %s20, 1
      %s28 = ssub.s32 %s20, %s27
      %p29 = scmp.eq.s32.totalorder %s28, 0
      %s31 = sadd.s32 %s30, 1
      %s32 = scalar_select %p29, %s30, %s31
      %p35 = pneg %p29
      %p36 = scmp.eq.s32.totalorder %s20, 1
      %p37 = por %p35, %p36
      %p38 = scmp.ne.s32.totalorder %s30, %s33
      %p39 = scmp.eq.s32.totalorder %s20, 0
      %p40 = por %p38, %p39
      %p41 = scmp.ne.s32.totalorder %s30, %s33
      %p42 = scmp.eq.s32.totalorder %s25, 1
      %p43 = por %p41, %p42
      %p44 = scmp.ne.s32.totalorder %s33, %s34
      %p45 = scmp.eq.s32.totalorder %s25, 0
      %p46 = por %p44, %p45
      %p47 = scmp.ne.s32.totalorder %s33, %s34
      %p48 = scmp.eq.s32.totalorder %s26, 1
      %p49 = por %p47, %p48
      %p51 = scmp.ne.s32.totalorder %s34, %s50
      %p52 = scmp.eq.s32.totalorder %s26, 0
      %p53 = por %p51, %p52
      %s55 = sadd.s32 %s54, 1
      %p58 = scmp.eq.s32.totalorder %s20, 1
      %p59 = scmp.ne.s32.totalorder %s54, %s56
      %p60 = scmp.eq.s32.totalorder %s20, 0
      %p61 = por %p59, %p60
      %p62 = scmp.ne.s32.totalorder %s54, %s56
      %p63 = scmp.eq.s32.totalorder %s25, 1
      %p64 = por %p62, %p63
      %p65 = scmp.ne.s32.totalorder %s56, %s57
      %p66 = scmp.eq.s32.totalorder %s25, 0
      %p67 = por %p65, %p66
      %p68 = scmp.ne.s32.totalorder %s56, %s57
      %p69 = scmp.eq.s32.totalorder %s26, 1
      %p70 = por %p68, %p69
      %p72 = scmp.ne.s32.totalorder %s57, %s71
      %p73 = scmp.eq.s32.totalorder %s26, 0
      %p74 = por %p72, %p73
      %s76 = sadd.s32 %s75, 1
      %p79 = scmp.eq.s32.totalorder %s20, 1
      %p80 = scmp.ne.s32.totalorder %s75, %s77
      %p81 = scmp.eq.s32.totalorder %s20, 0
      %p82 = por %p80, %p81
      %p83 = scmp.ne.s32.totalorder %s75, %s77
      %p84 = scmp.eq.s32.totalorder %s25, 1
      %p85 = por %p83, %p84
      %p86 = scmp.ne.s32.totalorder %s77, %s78
      %p87 = scmp.eq.s32.totalorder %s25, 0
      %p88 = por %p86, %p87
      %p89 = scmp.ne.s32.totalorder %s77, %s78
      %p90 = scmp.eq.s32.totalorder %s26, 1
      %p91 = por %p89, %p90
      %p93 = scmp.ne.s32.totalorder %s78, %s92
      %p94 = scmp.eq.s32.totalorder %s26, 0
      %p95 = por %p93, %p94
      %s97 = sadd.s32 %s96, 1
      %p100 = scmp.eq.s32.totalorder %s20, 1
      %p101 = scmp.ne.s32.totalorder %s96, %s98
      %p102 = scmp.eq.s32.totalorder %s20, 0
      %p103 = por %p101, %p102
      %p104 = scmp.ne.s32.totalorder %s96, %s98
      %p105 = scmp.eq.s32.totalorder %s25, 1
      %p106 = por %p104, %p105
      %p107 = scmp.ne.s32.totalorder %s98, %s99
      %p108 = scmp.eq.s32.totalorder %s25, 0
      %p109 = por %p107, %p108
      %p110 = scmp.ne.s32.totalorder %s98, %s99
      %p111 = scmp.eq.s32.totalorder %s26, 1
      %p112 = por %p110, %p111
      %p114 = scmp.ne.s32.totalorder %s99, %s113
      %p115 = scmp.eq.s32.totalorder %s26, 0
      %p116 = por %p114, %p115
      %s118 = sadd.s32 %s117, 1
      %p121 = scmp.eq.s32.totalorder %s20, 1
      %p122 = scmp.ne.s32.totalorder %s117, %s119
      %p123 = scmp.eq.s32.totalorder %s20, 0
      %p124 = por %p122, %p123
      %p125 = scmp.ne.s32.totalorder %s117, %s119
      %p126 = scmp.eq.s32.totalorder %s25, 1
      %p127 = por %p125, %p126
      %p128 = scmp.ne.s32.totalorder %s119, %s120
      %p129 = scmp.eq.s32.totalorder %s25, 0
      %p130 = por %p128, %p129
      %p131 = scmp.ne.s32.totalorder %s119, %s120
      %p132 = scmp.eq.s32.totalorder %s26, 1
      %p133 = por %p131, %p132
      %p135 = scmp.ne.s32.totalorder %s120, %s134
      %p136 = scmp.eq.s32.totalorder %s26, 0
      %p137 = por %p135, %p136
      %s139 = sadd.s32 %s138, 1
      %p142 = scmp.eq.s32.totalorder %s20, 1
      %p143 = scmp.ne.s32.totalorder %s138, %s140
      %p144 = scmp.eq.s32.totalorder %s20, 0
      %p145 = por %p143, %p144
      %p146 = scmp.ne.s32.totalorder %s138, %s140
      %p147 = scmp.eq.s32.totalorder %s25, 1
      %p148 = por %p146, %p147
      %p149 = scmp.ne.s32.totalorder %s140, %s141
      %p150 = scmp.eq.s32.totalorder %s25, 0
      %p151 = por %p149, %p150
      %p152 = scmp.ne.s32.totalorder %s140, %s141
      %p153 = scmp.eq.s32.totalorder %s26, 1
      %p154 = por %p152, %p153
      %p156 = scmp.ne.s32.totalorder %s141, %s155
      %p157 = scmp.eq.s32.totalorder %s26, 0
      %p158 = por %p156, %p157
      %s160 = sadd.s32 %s159, 1
      %p163 = scmp.eq.s32.totalorder %s20, 1
      %p164 = scmp.ne.s32.totalorder %s159, %s161
      %p165 = scmp.eq.s32.totalorder %s20, 0
      %p166 = por %p164, %p165
      %p167 = scmp.ne.s32.totalorder %s159, %s161
      %p168 = scmp.eq.s32.totalorder %s25, 1
      %p169 = por %p167, %p168
      %p170 = scmp.ne.s32.totalorder %s161, %s162
      %p171 = scmp.eq.s32.totalorder %s25, 0
      %p172 = por %p170, %p171
      %p173 = scmp.ne.s32.totalorder %s161, %s162
      %p174 = scmp.eq.s32.totalorder %s26, 1
      %p175 = por %p173, %p174
      %p177 = scmp.ne.s32.totalorder %s162, %s176
      %p178 = scmp.eq.s32.totalorder %s26, 0
      %p179 = por %p177, %p178
      %s181 = sadd.s32 %s180, 1
      %p184 = scmp.eq.s32.totalorder %s20, 1
      %p185 = scmp.ne.s32.totalorder %s180, %s182
      %p186 = scmp.eq.s32.totalorder %s20, 0
      %p187 = por %p185, %p186
      %p188 = scmp.ne.s32.totalorder %s180, %s182
      %p189 = scmp.eq.s32.totalorder %s25, 1
      %p190 = por %p188, %p189
      %p191 = scmp.ne.s32.totalorder %s182, %s183
      %p192 = scmp.eq.s32.totalorder %s25, 0
      %p193 = por %p191, %p192
      %p194 = scmp.ne.s32.totalorder %s182, %s183
      %p195 = scmp.eq.s32.totalorder %s26, 1
      %p196 = por %p194, %p195
      %p198 = scmp.ne.s32.totalorder %s183, %s197
      %p199 = scmp.eq.s32.totalorder %s26, 0
      %p200 = por %p198, %p199
      %s202 = sadd.s32 %s201, 1
      %p205 = scmp.eq.s32.totalorder %s20, 1
      %p206 = scmp.ne.s32.totalorder %s201, %s203
      %p207 = scmp.eq.s32.totalorder %s20, 0
      %p208 = por %p206, %p207
      %p209 = scmp.ne.s32.totalorder %s201, %s203
      %p210 = scmp.eq.s32.totalorder %s25, 1
      %p211 = por %p209, %p210
      %p212 = scmp.ne.s32.totalorder %s203, %s204
      %p213 = scmp.eq.s32.totalorder %s25, 0
      %p214 = por %p212, %p213
      %p215 = scmp.ne.s32.totalorder %s203, %s204
      %p216 = scmp.eq.s32.totalorder %s26, 1
      %p217 = por %p215, %p216
      %p219 = scmp.ne.s32.totalorder %s204, %s218
      %p220 = scmp.eq.s32.totalorder %s26, 0
      %p221 = por %p219, %p220
      %s223 = sadd.s32 %s222, 1
      %p226 = scmp.eq.s32.totalorder %s20, 1
      %p227 = scmp.ne.s32.totalorder %s222, %s224
      %p228 = scmp.eq.s32.totalorder %s20, 0
      %p229 = por %p227, %p228
      %p230 = scmp.ne.s32.totalorder %s222, %s224
      %p231 = scmp.eq.s32.totalorder %s25, 1
      %p232 = por %p230, %p231
      %p233 = scmp.ne.s32.totalorder %s224, %s225
      %p234 = scmp.eq.s32.totalorder %s25, 0
      %p235 = por %p233, %p234
      %p236 = scmp.ne.s32.totalorder %s224, %s225
      %p237 = scmp.eq.s32.totalorder %s26, 1
      %p238 = por %p236, %p237
      %p240 = scmp.ne.s32.totalorder %s225, %s239
      %p241 = scmp.eq.s32.totalorder %s26, 0
      %p242 = por %p240, %p241
      %s244 = sadd.s32 %s243, 1
      %p247 = scmp.eq.s32.totalorder %s20, 1
      %p248 = scmp.ne.s32.totalorder %s243, %s245
      %p249 = scmp.eq.s32.totalorder %s20, 0
      %p250 = por %p248, %p249
      %p251 = scmp.ne.s32.totalorder %s243, %s245
      %p252 = scmp.eq.s32.totalorder %s25, 1
      %p253 = por %p251, %p252
      %p254 = scmp.ne.s32.totalorder %s245, %s246
      %p255 = scmp.eq.s32.totalorder %s25, 0
      %p256 = por %p254, %p255
      %p257 = scmp.ne.s32.totalorder %s245, %s246
      %p258 = scmp.eq.s32.totalorder %s26, 1
      %p259 = por %p257, %p258
      %p261 = scmp.ne.s32.totalorder %s246, %s260
      %p262 = scmp.eq.s32.totalorder %s26, 0
      %p263 = por %p261, %p262
      %s264 = ssub.s32 %s20, %s27
      %p265 = scmp.eq.s32.totalorder %s264, 0
      %s267 = sadd.s32 %s266, 1
      %s268 = scalar_select %p265, %s266, %s267
      %p271 = pneg %p265
      %p272 = scmp.eq.s32.totalorder %s20, 1
      %p273 = por %p271, %p272
      %p274 = scmp.ne.s32.totalorder %s266, %s269
      %p275 = scmp.eq.s32.totalorder %s20, 0
      %p276 = por %p274, %p275
      %p277 = scmp.ne.s32.totalorder %s266, %s269
      %p278 = scmp.eq.s32.totalorder %s25, 1
      %p279 = por %p277, %p278
      %p280 = scmp.ne.s32.totalorder %s269, %s270
      %p281 = scmp.eq.s32.totalorder %s25, 0
      %p282 = por %p280, %p281
      %p283 = scmp.ne.s32.totalorder %s269, %s270
      %p284 = scmp.eq.s32.totalorder %s26, 1
      %p285 = por %p283, %p284
      %p287 = scmp.ne.s32.totalorder %s270, %s286
      %p288 = scmp.eq.s32.totalorder %s26, 0
      %p289 = por %p287, %p288
      %p290 = scmp.le.s32.totalorder 1, %s20
      %p291 = scmp.lt.s32.totalorder %s20, 3
      %p292 = pnand %p290, %p291
      %p293 = pneg %p292
      // Predicated region
      $region9: #{layer_forward.1} parent=5 // pred_check
        _
      $region10: #{layer_forward.1} parent=5 // pred_check_branch
        %295 = sbr.rel (%p292) target = $region12
      $region11: #{layer_forward.1} parent=5 // pred_region
        %s296 = ssub.s32 %s20, 1
        // Predicated region
        $region13: #{layer_forward.1} parent=11 // pred_check
          %p297 = pneg %p67
        $region14: #{layer_forward.1} parent=11 // pred_check_branch
          %299 = sbr.rel (%p297) target = $region16
        $region15: #{layer_forward.1} parent=11 // pred_region
          _
        $region16: #{layer_forward.1} parent=11 // pred_fallthru
          _
        // Predicated region
        $region17: #{layer_forward.1} parent=11 // pred_check
          %p300 = pneg %p88
        $region18: #{layer_forward.1} parent=11 // pred_check_branch
          %302 = sbr.rel (%p300) target = $region20
        $region19: #{layer_forward.1} parent=11 // pred_region
          _
        $region20: #{layer_forward.1} parent=11 // pred_fallthru
          _
        // Predicated region
        $region21: #{layer_forward.1} parent=11 // pred_check
          %p303 = pneg %p109
        $region22: #{layer_forward.1} parent=11 // pred_check_branch
          %305 = sbr.rel (%p303) target = $region24
        $region23: #{layer_forward.1} parent=11 // pred_region
          _
        $region24: #{layer_forward.1} parent=11 // pred_fallthru
          _
        // Predicated region
        $region25: #{layer_forward.1} parent=11 // pred_check
          %p306 = pneg %p130
        $region26: #{layer_forward.1} parent=11 // pred_check_branch
          %308 = sbr.rel (%p306) target = $region28
        $region27: #{layer_forward.1} parent=11 // pred_region
          _
        $region28: #{layer_forward.1} parent=11 // pred_fallthru
          _
        // Predicated region
        $region29: #{layer_forward.1} parent=11 // pred_check
          %p309 = pneg %p151
        $region30: #{layer_forward.1} parent=11 // pred_check_branch
          %311 = sbr.rel (%p309) target = $region32
        $region31: #{layer_forward.1} parent=11 // pred_region
          _
        $region32: #{layer_forward.1} parent=11 // pred_fallthru
          _
        // Predicated region
        $region33: #{layer_forward.1} parent=11 // pred_check
          %p312 = pneg %p172
        $region34: #{layer_forward.1} parent=11 // pred_check_branch
          %314 = sbr.rel (%p312) target = $region36
        $region35: #{layer_forward.1} parent=11 // pred_region
          _
        $region36: #{layer_forward.1} parent=11 // pred_fallthru
          _
        // Predicated region
        $region37: #{layer_forward.1} parent=11 // pred_check
          %p315 = pneg %p193
        $region38: #{layer_forward.1} parent=11 // pred_check_branch
          %317 = sbr.rel (%p315) target = $region40
        $region39: #{layer_forward.1} parent=11 // pred_region
          _
        $region40: #{layer_forward.1} parent=11 // pred_fallthru
          _
        // Predicated region
        $region41: #{layer_forward.1} parent=11 // pred_check
          %p318 = pneg %p214
        $region42: #{layer_forward.1} parent=11 // pred_check_branch
          %320 = sbr.rel (%p318) target = $region44
        $region43: #{layer_forward.1} parent=11 // pred_region
          _
        $region44: #{layer_forward.1} parent=11 // pred_fallthru
          _
        // Predicated region
        $region45: #{layer_forward.1} parent=11 // pred_check
          %p321 = pneg %p235
        $region46: #{layer_forward.1} parent=11 // pred_check_branch
          %323 = sbr.rel (%p321) target = $region48
        $region47: #{layer_forward.1} parent=11 // pred_region
          _
        $region48: #{layer_forward.1} parent=11 // pred_fallthru
          _
        // Predicated region
        $region49: #{layer_forward.1} parent=11 // pred_check
          %p324 = pneg %p256
        $region50: #{layer_forward.1} parent=11 // pred_check_branch
          %326 = sbr.rel (%p324) target = $region52
        $region51: #{layer_forward.1} parent=11 // pred_region
          _
        $region52: #{layer_forward.1} parent=11 // pred_fallthru
          _
      $region12: #{layer_forward.1} parent=5 // pred_fallthru
        _
      %p327 = scmp.lt.s32.totalorder %s20, 2
      // Predicated region
      $region53: #{layer_forward.1} parent=5 // pred_check
        %p328 = pneg %p327
      $region54: #{layer_forward.1} parent=5 // pred_check_branch
        %330 = sbr.rel (%p328) target = $region56
      $region55: #{layer_forward.1} parent=5 // pred_region
        // Predicated region
        $region57: #{layer_forward.1} parent=55 // pred_check
          %p331 = pneg %p40
        $region58: #{layer_forward.1} parent=55 // pred_check_branch
          %333 = sbr.rel (%p331) target = $region60
        $region59: #{layer_forward.1} parent=55 // pred_region
          %p334 = scmp.lt.s32.totalorder %s20, 1
          %s335 = scalar_select %p334, %s20, 1
          %s336 = smul.addr %s335, 4
          %s337 = scalar_lea.vmem %s0, %s336
        $region60: #{layer_forward.1} parent=55 // pred_fallthru
          _
      $region56: #{layer_forward.1} parent=5 // pred_fallthru
        _
      %p338 = scmp.le.s32.totalorder 1, %s20
      %p339 = scmp.lt.s32.totalorder %s20, 3
      %p340 = pnand %p338, %p339
      %p341 = pneg %p340
      // Predicated region
      $region61: #{layer_forward.1} parent=5 // pred_check
        _
      $region62: #{layer_forward.1} parent=5 // pred_check_branch
        %343 = sbr.rel (%p340) target = $region64
      $region63: #{layer_forward.1} parent=5 // pred_region
        %s344 = ssub.s32 %s20, 1
        %p345 = scmp.lt.s32.totalorder %s25, 1
        %s346 = scalar_select %p345, %s25, 1
        %s347 = smul.addr %s346, 4
        %s348 = scalar_lea.vmem %s0, %s347
        %p349 = pneg %p46
        %p350 = pneg %p43
        %p351 = pneg %p67
        %p352 = pneg %p64
        %p353 = pneg %p88
        %p354 = pneg %p85
        %p355 = pneg %p109
        %p356 = pneg %p106
        %p357 = pneg %p130
        %p358 = pneg %p127
        %p359 = pneg %p151
        %p360 = pneg %p148
        %p361 = pneg %p172
        %p362 = pneg %p169
        %p363 = pneg %p193
        %p364 = pneg %p190
        %p365 = pneg %p214
        %p366 = pneg %p211
        %p367 = pneg %p235
        %p368 = pneg %p232
        %p369 = pneg %p256
        %p370 = pneg %p253
        %p371 = pneg %p282
        %p372 = pneg %p279
        %s373 = sand.u32 %s269, 1
        %s374 = scalar_lea.sflag [#allocation3], %s373
        %s375 = sand.u32 %s269, 1
        %s376 = smul.addr %s375, 8
        %s377 = scalar_lea.vmem [#allocation2], %s376
        %p378 = scmp.lt.s32.totalorder %s25, 1
        %s379 = scalar_select %p378, %s25, 1
        %s380 = smul.addr %s379, 4
        %s381 = scalar_lea.vmem %s0, %s380
        %v383 = vld [vmem:[%s381] sm:$0xf]
        %v385 = vunpack.c.l.b16 %v383
        %v386 = vpack.c.b16 %v385, %v385
        %v387 = vrot.slane %v386, 2
        %388 = vrot.lane.b32.xlu0 %v387, 1
        %v389 = vpop.permute.xlu0 %388
        %vm390 = vcmask 7168
        %v393 = vsel %vm390, 0, %v389
        %v394 = vrot.slane %v386, 6
        %vm395 = vcmask 1041408
        %v397 = vsel %vm395, %v393, %v394
        %vm398 = vcmask 1043456
        %v399 = vsel %vm398, %v397, %v394
        %v400 = vld [vmem:[%s1] sm:$0xf]
        %v401 = vld [vmem:[%s2] sm:$0xff]
        %403 = vset.pattern.permute.xlu0 0
        %404 = vperm.xlu0 %403, %v401
        %v405 = vpop.permute.xlu0 %404
        %vm407 = vcmask 97280
        %v409 = vsel %vm407, %v400, 0
        %vm411 = vcmask 1045504
        %v412 = vsel %vm411, %v399, 0
        %414 = vmatpush.bf16.msra.mxu0 0
        %415 = vmatpush.bf16.msra.mxu0 0
        %416 = vmatpush.bf16.msra.mxu0 0
        %417 = vmatpush.bf16.msra.mxu0 0
        %418 = vmatpush.bf16.msra.mxu0 0
        %419 = vmatpush.bf16.msra.mxu0 0
        %420 = vmatpush.bf16.msra.mxu0 0
        %421 = vmatpush.bf16.msra.mxu0 %v412
        %422 = vmatmul.bf16.gmra.mxu0 %v409
        %v423 = vpop.f32.mrf.mxu0
        %v424 = vadd.f32 %v405, %v423
        %v425 = vpop.f32.mrf.mxu0
        %426 = vdwg.mxu0
        %v427 = vld [vmem:[%s3] sm:$0xf]
        %v428 = vld [vmem:[%s4] sm:$0xff]
        %430 = vset.pattern.permute.xlu0 0
        %431 = vperm.xlu0 %430, %v428
        %v432 = vpop.permute.xlu0 %431
        %vm434 = vcmask 31744
        %v436 = vsel %vm434, %v427, 0
        %v439 = vsel %vm395, %v383, 0
        %441 = vmatpush.bf16.msra.mxu0 0
        %442 = vmatpush.bf16.msra.mxu0 0
        %443 = vmatpush.bf16.msra.mxu0 0
        %444 = vmatpush.bf16.msra.mxu0 0
        %445 = vmatpush.bf16.msra.mxu0 0
        %446 = vmatpush.bf16.msra.mxu0 0
        %447 = vmatpush.bf16.msra.mxu0 0
        %448 = vmatpush.bf16.msra.mxu0 %v439
        %449 = vmatmul.bf16.gmra.mxu0 %v436
        %v450 = vpop.f32.mrf.mxu0
        %v451 = vadd.f32 %v432, %v450
        %v452 = vpop.f32.mrf.mxu0
        %453 = vdwg.mxu0
        %v454 = vpack.c.bf16 %v424, %v424
        %v456 = vunpack.c.l.b16 %v454
        %v457 = vpack.c.b16 %v456, %v456
        %458 = vrot.lane.b32.xlu0 %v457, 1
        %v459 = vpop.permute.xlu0 %458
        %v461 = vsel %vm390, 0, %v459
        %462 = vrot.lane.b32.xlu0 %v457, 127
        %v463 = vpop.permute.xlu0 %462
        %vm464 = vcmask 56320
        %v466 = vsel %vm464, %v463, 0
        %v468 = vsel %vm398, %v461, %v457
        %v470 = vld [vmem:[%s5] sm:$0xf]
        %v471 = vld [vmem:[%s6] sm:$0xff]
        %473 = vset.pattern.permute.xlu0 0
        %474 = vperm.xlu0 %473, %v471
        %v475 = vpop.permute.xlu0 %474
        %vm477 = vcmask 195584
        %v479 = vsel %vm477, %v470, 0
        %v481 = vsel %vm398, %v466, 0
        %483 = vmatpush.bf16.msra.mxu0 0
        %484 = vmatpush.bf16.msra.mxu0 0
        %485 = vmatpush.bf16.msra.mxu0 0
        %486 = vmatpush.bf16.msra.mxu0 0
        %487 = vmatpush.bf16.msra.mxu0 0
        %488 = vmatpush.bf16.msra.mxu0 0
        %489 = vmatpush.bf16.msra.mxu0 %v481
        %490 = vmatpush.bf16.msra.mxu0 %v468
        %491 = vmatmul.bf16.gmra.mxu0 %v479
        %v492 = vpop.f32.mrf.mxu0
        %v493 = vadd.f32 %v475, %v492
        %v494 = vpop.f32.mrf.mxu0
        %495 = vdwg.mxu0
        %v496 = vadd.f32 %v493, %v451
        %v497 = vmax.f32 %v496, 0.0
        %v498 = vpack.c.bf16 %v497, %v497
        %v500 = vunpack.c.l.b16 %v498
        %v501 = vpack.c.b16 %v500, %v500
        %502 = vrot.lane.b32.xlu0 %v501, 1
        %v503 = vpop.permute.xlu0 %502
        %v505 = vsel %vm390, 0, %v503
        %506 = vrot.lane.b32.xlu0 %v501, 127
        %v507 = vpop.permute.xlu0 %506
        %v509 = vsel %vm464, %v507, 0
        %v511 = vsel %vm398, %v505, %v501
        %v513 = vld [vmem:[%s7] sm:$0xf]
        %v514 = vld [vmem:[%s8] sm:$0xff]
        %516 = vset.pattern.permute.xlu0 0
        %517 = vperm.xlu0 %516, %v514
        %v518 = vpop.permute.xlu0 %517
        %v521 = vsel %vm477, %v513, 0
        %v523 = vsel %vm398, %v509, 0
        %525 = vmatpush.bf16.msra.mxu0 0
        %526 = vmatpush.bf16.msra.mxu0 0
        %527 = vmatpush.bf16.msra.mxu0 0
        %528 = vmatpush.bf16.msra.mxu0 0
        %529 = vmatpush.bf16.msra.mxu0 0
        %530 = vmatpush.bf16.msra.mxu0 0
        %531 = vmatpush.bf16.msra.mxu0 %v523
        %532 = vmatpush.bf16.msra.mxu0 %v511
        %533 = vmatmul.bf16.gmra.mxu0 %v521
        %v534 = vpop.f32.mrf.mxu0
        %v535 = vadd.f32 %v518, %v534
        %v536 = vpop.f32.mrf.mxu0
        %537 = vdwg.mxu0
        %v538 = vpack.c.bf16 %v535, %v535
        %v540 = vunpack.c.l.b16 %v538
        %v541 = vpack.c.b16 %v540, %v540
        %542 = vrot.lane.b32.xlu0 %v541, 1
        %v543 = vpop.permute.xlu0 %542
        %v545 = vsel %vm390, 0, %v543
        %546 = vrot.lane.b32.xlu0 %v541, 127
        %v547 = vpop.permute.xlu0 %546
        %v549 = vsel %vm464, %v547, 0
        %v551 = vsel %vm398, %v545, %v541
        %v553 = vld [vmem:[%s9] sm:$0xf]
        %v554 = vld [vmem:[%s10] sm:$0xff]
        %556 = vset.pattern.permute.xlu0 0
        %557 = vperm.xlu0 %556, %v554
        %v558 = vpop.permute.xlu0 %557
        %v561 = vsel %vm477, %v553, 0
        %v563 = vsel %vm398, %v549, 0
        %565 = vmatpush.bf16.msra.mxu0 0
        %566 = vmatpush.bf16.msra.mxu0 0
        %567 = vmatpush.bf16.msra.mxu0 0
        %568 = vmatpush.bf16.msra.mxu0 0
        %569 = vmatpush.bf16.msra.mxu0 0
        %570 = vmatpush.bf16.msra.mxu0 0
        %571 = vmatpush.bf16.msra.mxu0 %v563
        %572 = vmatpush.bf16.msra.mxu0 %v551
        %573 = vmatmul.bf16.gmra.mxu0 %v561
        %v574 = vpop.f32.mrf.mxu0
        %v575 = vadd.f32 %v558, %v574
        %v576 = vpop.f32.mrf.mxu0
        %577 = vdwg.mxu0
        %v578 = vadd.f32 %v575, %v497
        %v579 = vmax.f32 %v578, 0.0
        %vm580 = vcmask 64512
        %581 = vst.msk [vmem:[%s377] sm:$0xff] %vm580, %v579
        %s582 = sand.u32 %s269, 1
        %s583 = scalar_lea.sflag [#allocation3], %s582
        %s584 = sand.u32 %s269, 1
        %s585 = smul.addr %s584, 8
        %s586 = scalar_lea.vmem [#allocation2], %s585
        // Predicated region
        $region65: #{layer_forward.1} parent=63 // pred_check
          %p587 = pneg %p279
        $region66: #{layer_forward.1} parent=63 // pred_check_branch
          %589 = sbr.rel (%p587) target = $region68
        $region67: #{layer_forward.1} parent=63 // pred_region
          %591 = vsyncadd %s583, 0
          %s592 = smul.addr %s25, 8
          %s593 = scalar_lea.hbm %s11, %s592
          %s595 = sshll.u32 %s586, 4
          %s596 = int_to_ptr.vmem [resolvable:$true] %s595
          %s597 = sshll.u32 %s593, 4
          %s598 = int_to_ptr.hbm [resolvable:$true] %s597
          %600 = dma.vmem_to_hbm [thread:$0]  %s596, 128, %s598, %s583
        $region68: #{layer_forward.1} parent=63 // pred_fallthru
          _
      $region64: #{layer_forward.1} parent=5 // pred_fallthru
        _
      %p601 = scmp.le.s32.totalorder 2, %s20
      // Predicated region
      $region69: #{layer_forward.1} parent=5 // pred_check
        %p602 = pneg %p601
      $region70: #{layer_forward.1} parent=5 // pred_check_branch
        %604 = sbr.rel (%p602) target = $region72
      $region71: #{layer_forward.1} parent=5 // pred_region
        %s605 = ssub.s32 %s20, 2
        // Predicated region
        $region73: #{layer_forward.1} parent=71 // pred_check
          %p606 = pneg %p285
        $region74: #{layer_forward.1} parent=71 // pred_check_branch
          %608 = sbr.rel (%p606) target = $region76
        $region75: #{layer_forward.1} parent=71 // pred_region
          %s609 = sand.u32 %s270, 1
          %s610 = scalar_lea.sflag [#allocation3], %s609
          %s611 = sand.u32 %s270, 1
          %s612 = smul.addr %s611, 8
          %s613 = scalar_lea.vmem [#allocation2], %s612
          %615 = dma.done %s610, 128
        $region76: #{layer_forward.1} parent=71 // pred_fallthru
          _
      $region72: #{layer_forward.1} parent=5 // pred_fallthru
        _
    $region6: #{layer_forward.1} parent=1 // loop_footer
      %s24 = sadd.s32 1, %s20
    $region7: #{layer_forward.1} parent=1 // loop_footer_branch
      %19 = sbr.rel target = $region3
    $region8: #{layer_forward.1} parent=1 // loop_exit
      _
    %616 = vsyncpa [#allocation3], 1
    %s617 = scalar_lea.sflag [#allocation3], 1
    %618 = vsyncpa %s617, 1

</llo_original>
